<compile_context>
chip_gen: v7x
topology: tpu7x:2x2x1
jax: 0.10.0
libtpu: 0.0.40
codegen_flags: <defaults>
</compile_context>

<pallas_src>
import jax
import jax.numpy as jnp
from jax.experimental import pallas as pl
from jax.experimental.pallas import tpu as pltpu


def resblock_kernel(x_ref, w1_ref, b1_ref, w2_ref, b2_ref, out_ref):
    # x_ref  : (Nb, H, W*C)    lane-fused input block
    # w1_ref : (3*W*C, W*C)    fused conv1 weight (3 row-taps stacked on K)
    # b1_ref : (1, W*C)        bias tiled per W column
    # w2_ref : (3*W*C, W*C)    fused conv2 weight
    # b2_ref : (1, W*C)
    # out_ref: (Nb, H, W*C)
    nb, H, L = x_ref.shape
    R = nb * H

    def conv3x3(a3, w_full):
        # a3: (nb, H, L) activations. Build the (R, 3L) im2col patch matrix
        # [rows p-1 | rows p | rows p+1] (zero rows at image borders) and do a
        # single MXU matmul; the W-direction shifts / SAME padding live in
        # w_full, so no masks or lane shuffles are needed here.
        z = jnp.zeros((nb, 1, L), jnp.float32)
        up = jnp.concatenate([z, a3[:, :H - 1, :]], axis=1)      # a[p-1]
        dn = jnp.concatenate([a3[:, 1:, :], z], axis=1)          # a[p+1]
        patches = jnp.concatenate(
            [up.reshape(R, L), a3.reshape(R, L), dn.reshape(R, L)], axis=1)
        return jnp.dot(patches, w_full, preferred_element_type=jnp.float32)

    x3 = x_ref[...].astype(jnp.float32)                           # (nb, H, L)
    h = jnp.maximum(conv3x3(x3, w1_ref[...]) + b1_ref[...], 0.0)  # (R, L)
    y = jnp.maximum(conv3x3(h.reshape(nb, H, L), w2_ref[...])
                    + b2_ref[...] + x3.reshape(R, L), 0.0)
    out_ref[...] = y.reshape(nb, H, L).astype(out_ref.dtype)


def _fused_conv3x3_weight(w_oihw, W):
    """OIHW 3x3 conv weight -> (3*W*Cin, W*Cout) banded block matrix.

    Row block ky holds sum_kx kron(S_kx, w[ky,kx]) with S_kx = eye(W, k=-(kx-1)),
    i.e. the W-direction tap shift and the SAME zero padding are folded into the
    matmul weight (out-of-range columns simply have no band entry).
    """
    Cout, Cin, KH, KW = w_oihw.shape
    w_k = jnp.transpose(w_oihw, (2, 3, 1, 0))          # (KH, KW, Cin, Cout)
    blocks = []
    for ky in range(KH):
        blk = None
        for kx in range(KW):
            s = jnp.eye(W, k=-(kx - 1), dtype=w_oihw.dtype)   # (W, W) shift/pad
            m = jnp.kron(s, w_k[ky, kx])                      # (W*Cin, W*Cout)
            blk = m if blk is None else blk + m
        blocks.append(blk)
    return jnp.concatenate(blocks, axis=0)             # (KH*W*Cin, W*Cout)


def residual_block(x_nchw, w1_oihw, b1, w2_oihw, b2):
    """ResidualBlock forward. x_nchw: (N, C, H, W); weights in PyTorch OIHW."""
    N, C, H, W = x_nchw.shape
    Cout = w1_oihw.shape[0]
    assert Cout == C, "residual add requires in_channels == out_channels"
    L = W * C

    # ---- wrapper-side layout plumbing (one-off, plain JAX) ----
    x = jnp.transpose(x_nchw, (0, 2, 3, 1)).reshape(N, H, L)      # lane-fused
    w1_f = _fused_conv3x3_weight(w1_oihw, W)                      # (3L, L)
    w2_f = _fused_conv3x3_weight(w2_oihw, W)                      # (3L, L)
    b1_row = jnp.tile(b1, W).reshape(1, L)
    b2_row = jnp.tile(b2, W).reshape(1, L)

    # ---- batch blocking: several images per grid step (VMEM-capped), but keep
    #      >=2 grid steps when N allows (pipelining + both v7x TensorCores). ----
    bytes_per_img = H * L * 4                                     # f32 activations
    cap = max(1, (2 * 1024 * 1024) // bytes_per_img)              # ~2 MiB / block
    if N >= 2:
        cap = min(cap, max(1, N // 2))
    nb = 1
    for d in range(1, N + 1):
        if N % d == 0 and d <= cap:
            nb = d
    grid = (N // nb,)

    out = pl.pallas_call(
        resblock_kernel,
        out_shape=jax.ShapeDtypeStruct((N, H, L), x.dtype),
        grid_spec=pltpu.PrefetchScalarGridSpec(
            num_scalar_prefetch=0,
            grid=grid,
            in_specs=[
                pl.BlockSpec((nb, H, L), lambda n: (n, 0, 0)),
                pl.BlockSpec((3 * L, L), lambda n: (0, 0)),   # grid-invariant
                pl.BlockSpec((1, L), lambda n: (0, 0)),
                pl.BlockSpec((3 * L, L), lambda n: (0, 0)),
                pl.BlockSpec((1, L), lambda n: (0, 0)),
            ],
            out_specs=pl.BlockSpec((nb, H, L), lambda n: (n, 0, 0)),
        ),
        compiler_params=pltpu.CompilerParams(
            dimension_semantics=("parallel",),
            vmem_limit_bytes=32 * 1024 * 1024,   # explicit; safe on v5e/v6e/v7x
        ),
    )(x, w1_f, b1_row, w2_f, b2_row)

    # lane-fused -> NHWC -> NCHW
    return jnp.transpose(out.reshape(N, H, W, C), (0, 3, 1, 2))


def _reference(x_nchw, w1, b1, w2, b2):
    """Pure-JAX reference (matches F.conv2d semantics, NCHW / OIHW)."""
    dn = jax.lax.conv_dimension_numbers(x_nchw.shape, w1.shape,
                                        ("NCHW", "OIHW", "NCHW"))
    c1 = jax.lax.conv_general_dilated(x_nchw, w1, (1, 1), "SAME",
                                      dimension_numbers=dn)
    h = jax.nn.relu(c1 + b1[None, :, None, None])
    c2 = jax.lax.conv_general_dilated(h, w2, (1, 1), "SAME",
                                      dimension_numbers=dn)
    return jax.nn.relu(c2 + b2[None, :, None, None] + x_nchw)


if __name__ == "__main__":
    # Small shapes consistent with ResidualBlock(in_channels=8, out_channels=8).
    # W * C = 128 makes the lane-fused layout exactly one lane-tile wide.
    N, C, H, W = 2, 8, 16, 16
    key = jax.random.PRNGKey(0)
    k_x, k_w1, k_b1, k_w2, k_b2 = jax.random.split(key, 5)

    # Deterministic PyTorch-style uniform init: bound = 1/sqrt(fan_in)
    bound = 1.0 / jnp.sqrt(jnp.float32(C * 3 * 3))
    x = jax.random.normal(k_x, (N, C, H, W), jnp.float32)
    w1 = jax.random.uniform(k_w1, (C, C, 3, 3), jnp.float32, -bound, bound)
    b1 = jax.random.uniform(k_b1, (C,), jnp.float32, -bound, bound)
    w2 = jax.random.uniform(k_w2, (C, C, 3, 3), jnp.float32, -bound, bound)
    b2 = jax.random.uniform(k_b2, (C,), jnp.float32, -bound, bound)

    out = residual_block(x, w1, b1, w2, b2)
    out = jax.block_until_ready(out)

    ref = _reference(x, w1, b1, w2, b2)
    assert out.shape == (N, C, H, W)
    assert jnp.allclose(out, ref, atol=1e-4, rtol=1e-4), "mismatch vs reference"

    print("KERNEL_OK")
</pallas_src>

<mosaic_0001>
module attributes {stable_mosaic.version = 11 : i64} {
  func.func @resblock_kernel(%arg0: i32, %arg1: memref<1x16x128xf32, #tpu.memory_space<vmem>>, %arg2: memref<384x128xf32, #tpu.memory_space<vmem>>, %arg3: memref<1x128xf32, #tpu.memory_space<vmem>>, %arg4: memref<384x128xf32, #tpu.memory_space<vmem>>, %arg5: memref<1x128xf32, #tpu.memory_space<vmem>>, %arg6: memref<1x16x128xf32, #tpu.memory_space<vmem>>) attributes {dimension_semantics = [#tpu.dimension_semantics<parallel>], iteration_bounds = array<i64: 2>, scalar_prefetch = 0 : i64, scratch_operands = 0 : i64, tpu.core_type = #tpu.core_type<tc>, window_params = [{transform_indices = @transform_0, window_bounds = array<i64: 1, 16, 128>}, {pipeline_mode = #tpu.pipeline_mode<synchronous>, transform_indices = @transform_1, window_bounds = array<i64: 384, 128>}, {pipeline_mode = #tpu.pipeline_mode<synchronous>, transform_indices = @transform_2, window_bounds = array<i64: 1, 128>}, {pipeline_mode = #tpu.pipeline_mode<synchronous>, transform_indices = @transform_3, window_bounds = array<i64: 384, 128>}, {pipeline_mode = #tpu.pipeline_mode<synchronous>, transform_indices = @transform_4, window_bounds = array<i64: 1, 128>}, {transform_indices = @transform_5, window_bounds = array<i64: 1, 16, 128>}]} {
    %c0 = arith.constant 0 : index
    %c0_0 = arith.constant 0 : index
    %c0_1 = arith.constant 0 : index
    %0 = vector.load %arg1[%c0, %c0_0, %c0_1] : memref<1x16x128xf32, #tpu.memory_space<vmem>>, vector<1x16x128xf32>
    %c0_2 = arith.constant 0 : index
    %c0_3 = arith.constant 0 : index
    %1 = vector.load %arg2[%c0_2, %c0_3] : memref<384x128xf32, #tpu.memory_space<vmem>>, vector<384x128xf32>
    %cst = arith.constant 0.000000e+00 : f32
    %2 = vector.broadcast %cst : f32 to vector<1x1x128xf32>
    %3 = vector.extract_strided_slice %0 {offsets = [0, 0, 0], sizes = [1, 15, 128], strides = [1, 1, 1]} : vector<1x16x128xf32> to vector<1x15x128xf32>
    %4 = tpu.concatenate %2, %3 in 1 : vector<1x1x128xf32>, vector<1x15x128xf32> -> vector<1x16x128xf32>
    %5 = vector.extract_strided_slice %0 {offsets = [0, 1, 0], sizes = [1, 15, 128], strides = [1, 1, 1]} : vector<1x16x128xf32> to vector<1x15x128xf32>
    %6 = tpu.concatenate %5, %2 in 1 : vector<1x15x128xf32>, vector<1x1x128xf32> -> vector<1x16x128xf32>
    %7 = vector.shape_cast %4 : vector<1x16x128xf32> to vector<16x128xf32>
    %8 = vector.shape_cast %0 : vector<1x16x128xf32> to vector<16x128xf32>
    %9 = vector.shape_cast %6 : vector<1x16x128xf32> to vector<16x128xf32>
    %10 = tpu.concatenate %7, %8, %9 in 1 : vector<16x128xf32>, vector<16x128xf32>, vector<16x128xf32> -> vector<16x384xf32>
    %cst_4 = arith.constant dense<0.000000e+00> : vector<16x128xf32>
    %11 = tpu.matmul %10, %1, %cst_4 {dimension_numbers = #tpu.dot_dimension_numbers<[1], [0], [0], [1], [0, 0, 1, 1], [], []>} : vector<16x384xf32>, vector<384x128xf32>, vector<16x128xf32> -> vector<16x128xf32>
    %c0_5 = arith.constant 0 : index
    %c0_6 = arith.constant 0 : index
    %12 = vector.load %arg3[%c0_5, %c0_6] : memref<1x128xf32, #tpu.memory_space<vmem>>, vector<1x128xf32>
    %13 = vector.broadcast %12 : vector<1x128xf32> to vector<16x128xf32>
    %14 = arith.addf %11, %13 : vector<16x128xf32>
    %cst_7 = arith.constant 0.000000e+00 : f32
    %15 = vector.broadcast %cst_7 : f32 to vector<16x128xf32>
    %16 = arith.maximumf %14, %15 : vector<16x128xf32>
    %17 = vector.shape_cast %16 : vector<16x128xf32> to vector<1x16x128xf32>
    %c0_8 = arith.constant 0 : index
    %c0_9 = arith.constant 0 : index
    %18 = vector.load %arg4[%c0_8, %c0_9] : memref<384x128xf32, #tpu.memory_space<vmem>>, vector<384x128xf32>
    %cst_10 = arith.constant 0.000000e+00 : f32
    %19 = vector.broadcast %cst_10 : f32 to vector<1x1x128xf32>
    %20 = vector.extract_strided_slice %17 {offsets = [0, 0, 0], sizes = [1, 15, 128], strides = [1, 1, 1]} : vector<1x16x128xf32> to vector<1x15x128xf32>
    %21 = tpu.concatenate %19, %20 in 1 : vector<1x1x128xf32>, vector<1x15x128xf32> -> vector<1x16x128xf32>
    %22 = vector.extract_strided_slice %17 {offsets = [0, 1, 0], sizes = [1, 15, 128], strides = [1, 1, 1]} : vector<1x16x128xf32> to vector<1x15x128xf32>
    %23 = tpu.concatenate %22, %19 in 1 : vector<1x15x128xf32>, vector<1x1x128xf32> -> vector<1x16x128xf32>
    %24 = vector.shape_cast %21 : vector<1x16x128xf32> to vector<16x128xf32>
    %25 = vector.shape_cast %17 : vector<1x16x128xf32> to vector<16x128xf32>
    %26 = vector.shape_cast %23 : vector<1x16x128xf32> to vector<16x128xf32>
    %27 = tpu.concatenate %24, %25, %26 in 1 : vector<16x128xf32>, vector<16x128xf32>, vector<16x128xf32> -> vector<16x384xf32>
    %cst_11 = arith.constant dense<0.000000e+00> : vector<16x128xf32>
    %28 = tpu.matmul %27, %18, %cst_11 {dimension_numbers = #tpu.dot_dimension_numbers<[1], [0], [0], [1], [0, 0, 1, 1], [], []>} : vector<16x384xf32>, vector<384x128xf32>, vector<16x128xf32> -> vector<16x128xf32>
    %c0_12 = arith.constant 0 : index
    %c0_13 = arith.constant 0 : index
    %29 = vector.load %arg5[%c0_12, %c0_13] : memref<1x128xf32, #tpu.memory_space<vmem>>, vector<1x128xf32>
    %30 = vector.broadcast %29 : vector<1x128xf32> to vector<16x128xf32>
    %31 = arith.addf %28, %30 : vector<16x128xf32>
    %32 = vector.shape_cast %0 : vector<1x16x128xf32> to vector<16x128xf32>
    %33 = arith.addf %31, %32 : vector<16x128xf32>
    %cst_14 = arith.constant 0.000000e+00 : f32
    %34 = vector.broadcast %cst_14 : f32 to vector<16x128xf32>
    %35 = arith.maximumf %33, %34 : vector<16x128xf32>
    %36 = vector.shape_cast %35 : vector<16x128xf32> to vector<1x16x128xf32>
    %c0_15 = arith.constant 0 : index
    %c0_16 = arith.constant 0 : index
    %c0_17 = arith.constant 0 : index
    %37 = vector.load %arg6[%c0_15, %c0_16, %c0_17] : memref<1x16x128xf32, #tpu.memory_space<vmem>>, vector<1x16x128xf32>
    tpu.vector_store %arg6[%c0_15, %c0_16, %c0_17], %36 {strides = array<i32>} : memref<1x16x128xf32, #tpu.memory_space<vmem>>, vector<1x16x128xf32>,
    return
  }
  func.func @transform_0(%arg0: i32) -> (i32, i32, i32) {
    %c0_i32 = arith.constant 0 : i32
    %c0_i32_0 = arith.constant 0 : i32
    %c0_i32_1 = arith.constant 0 : i32
    return %arg0, %c0_i32, %c0_i32_0 : i32, i32, i32
  }
  func.func @transform_1(%arg0: i32) -> (i32, i32) {
    %c0_i32 = arith.constant 0 : i32
    %c0_i32_0 = arith.constant 0 : i32
    %c0_i32_1 = arith.constant 0 : i32
    return %c0_i32, %c0_i32_0 : i32, i32
  }
  func.func @transform_2(%arg0: i32) -> (i32, i32) {
    %c0_i32 = arith.constant 0 : i32
    %c0_i32_0 = arith.constant 0 : i32
    %c0_i32_1 = arith.constant 0 : i32
    return %c0_i32, %c0_i32_0 : i32, i32
  }
  func.func @transform_3(%arg0: i32) -> (i32, i32) {
    %c0_i32 = arith.constant 0 : i32
    %c0_i32_0 = arith.constant 0 : i32
    %c0_i32_1 = arith.constant 0 : i32
    return %c0_i32, %c0_i32_0 : i32, i32
  }
  func.func @transform_4(%arg0: i32) -> (i32, i32) {
    %c0_i32 = arith.constant 0 : i32
    %c0_i32_0 = arith.constant 0 : i32
    %c0_i32_1 = arith.constant 0 : i32
    return %c0_i32, %c0_i32_0 : i32, i32
  }
  func.func @transform_5(%arg0: i32) -> (i32, i32, i32) {
    %c0_i32 = arith.constant 0 : i32
    %c0_i32_0 = arith.constant 0 : i32
    %c0_i32_1 = arith.constant 0 : i32
    return %arg0, %c0_i32, %c0_i32_0 : i32, i32, i32
  }
}

</mosaic_0001>

<llo_original>
// kernel: tpu_custom_call.1
$region0: #{tpu_custom_call.1}
  #allocation0 [shape = 'u32[]', space=smem, size = 0x4, offset = 0x4, fixed_abs, tag = 'smem constant byte address 0x4 - core index']
  #allocation1 [shape = 'u32[144,128]{1,0:T(1,128)}', space=vmem, size = 0x12000, scoped, tag = 'internal scratch']
  %s0 = inlined_call_operand.hbm [shape: f32[2,16,128], index: 0, kind: input, shape index: {}]
  %s1 = inlined_call_operand.hbm [shape: f32[384,128], index: 1, kind: input, shape index: {}]
  %s2 = inlined_call_operand.vmem [shape: f32[1,128], index: 2, kind: input, shape index: {}]
  %s3 = inlined_call_operand.hbm [shape: f32[384,128], index: 3, kind: input, shape index: {}]
  %s4 = inlined_call_operand.vmem [shape: f32[1,128], index: 4, kind: input, shape index: {}]
  %s5 = inlined_call_operand.hbm [shape: f32[2,16,128], index: 5, kind: output, shape index: {}]
  %s6 = sld [smem:[#allocation0]]
  $region65: #{tpu_custom_call.1} parent=0
    _
  %s8 = ssub.s32 1, %s6
  %s9 = scalar_select 0, %s8, %s6
  $region1: #{tpu_custom_call.1} parent=0
    #allocation2 [shape = 'u8[16384]{0}', space=vmem, size = 0x4000, scoped, tag = 'input window, operand 0']
    #allocation3 [shape = 's32[2]{0}', space=sflag, size = 0x8, scoped, tag = 'scoped memory for tpu_custom_call.1']
    #allocation4 [shape = 's32[2]{0}', space=sflag, size = 0x8, scoped, tag = 'scoped memory for tpu_custom_call.1']
    #allocation5 [shape = 'u8[196608]{0}', space=vmem, size = 0x30000, scoped, tag = 'input window, operand 1, single buffered']
    #allocation6 [shape = 's32[1]{0}', space=sflag, size = 0x4, scoped, tag = 'scoped memory for tpu_custom_call.1']
    #allocation7 [shape = 'u8[196608]{0}', space=vmem, size = 0x30000, scoped, tag = 'input window, operand 3, single buffered']
    #allocation8 [shape = 'u8[16384]{0}', space=vmem, size = 0x4000, scoped, tag = 'output window, operand 0']
    %10 = vsyncpa [#allocation3], 0
    %s11 = scalar_lea.sflag [#allocation3], 1
    %12 = vsyncpa %s11, 0
    %13 = vsyncpa [#allocation6], 0
    %14 = vsyncpa [#allocation4], 0
    %s15 = scalar_lea.sflag [#allocation4], 1
    %16 = vsyncpa %s15, 0
    loop: start=0, step=1, limit=4
    $region2: #{tpu_custom_call.1} parent=1 // loop_pre_header
      _
    $region3: #{tpu_custom_call.1} parent=1 // loop_header
      %s18 = sphi 0, %s22
      %p19 = scmp.ge.s32.totalorder %s18, 4
      %s28 = sphi 0, %s30
      %s31 = sphi 0, %s28
      %s32 = sphi 0, %s31
      %s48 = sphi 0, %s32
      %s52 = sphi 0, %s52
      %s54 = sphi 0, %s52
      %s55 = sphi 0, %s54
      %s69 = sphi 0, %s55
      %s73 = sphi 0, %s73
      %s75 = sphi 0, %s73
      %s76 = sphi 0, %s75
      %s90 = sphi 0, %s76
      %s94 = sphi 0, %s94
      %s96 = sphi 0, %s94
      %s97 = sphi 0, %s96
      %s111 = sphi 0, %s97
      %s115 = sphi 0, %s115
      %s117 = sphi 0, %s115
      %s118 = sphi 0, %s117
      %s132 = sphi 0, %s118
      %s138 = sphi 0, %s140
      %s141 = sphi 0, %s138
      %s142 = sphi 0, %s141
      %s158 = sphi 0, %s142
    $region4: #{tpu_custom_call.1} parent=1 // loop_header_branch
      %21 = sbr.rel (%p19) target = $region8
    $region5: #{tpu_custom_call.1} parent=1 // loop_body
      %s23 = ssub.s32 %s18, 1
      %s24 = ssub.s32 %s18, 2
      %s25 = sadd.s32 %s18, 1
      %s26 = ssub.s32 %s18, %s25
      %p27 = scmp.eq.s32.totalorder %s26, 0
      %s29 = sadd.s32 %s28, 1
      %s30 = scalar_select %p27, %s28, %s29
      %p33 = pneg %p27
      %p34 = scmp.eq.s32.totalorder %s18, 1
      %p35 = por %p33, %p34
      %p36 = scmp.ne.s32.totalorder %s28, %s31
      %p37 = scmp.eq.s32.totalorder %s18, 0
      %p38 = por %p36, %p37
      %p39 = scmp.ne.s32.totalorder %s28, %s31
      %p40 = scmp.eq.s32.totalorder %s23, 1
      %p41 = por %p39, %p40
      %p42 = scmp.ne.s32.totalorder %s31, %s32
      %p43 = scmp.eq.s32.totalorder %s23, 0
      %p44 = por %p42, %p43
      %p45 = scmp.ne.s32.totalorder %s31, %s32
      %p46 = scmp.eq.s32.totalorder %s24, 1
      %p47 = por %p45, %p46
      %p49 = scmp.ne.s32.totalorder %s32, %s48
      %p50 = scmp.eq.s32.totalorder %s24, 0
      %p51 = por %p49, %p50
      %s53 = sadd.s32 %s52, 1
      %p56 = scmp.eq.s32.totalorder %s18, 1
      %p57 = scmp.ne.s32.totalorder %s52, %s54
      %p58 = scmp.eq.s32.totalorder %s18, 0
      %p59 = por %p57, %p58
      %p60 = scmp.ne.s32.totalorder %s52, %s54
      %p61 = scmp.eq.s32.totalorder %s23, 1
      %p62 = por %p60, %p61
      %p63 = scmp.ne.s32.totalorder %s54, %s55
      %p64 = scmp.eq.s32.totalorder %s23, 0
      %p65 = por %p63, %p64
      %p66 = scmp.ne.s32.totalorder %s54, %s55
      %p67 = scmp.eq.s32.totalorder %s24, 1
      %p68 = por %p66, %p67
      %p70 = scmp.ne.s32.totalorder %s55, %s69
      %p71 = scmp.eq.s32.totalorder %s24, 0
      %p72 = por %p70, %p71
      %s74 = sadd.s32 %s73, 1
      %p77 = scmp.eq.s32.totalorder %s18, 1
      %p78 = scmp.ne.s32.totalorder %s73, %s75
      %p79 = scmp.eq.s32.totalorder %s18, 0
      %p80 = por %p78, %p79
      %p81 = scmp.ne.s32.totalorder %s73, %s75
      %p82 = scmp.eq.s32.totalorder %s23, 1
      %p83 = por %p81, %p82
      %p84 = scmp.ne.s32.totalorder %s75, %s76
      %p85 = scmp.eq.s32.totalorder %s23, 0
      %p86 = por %p84, %p85
      %p87 = scmp.ne.s32.totalorder %s75, %s76
      %p88 = scmp.eq.s32.totalorder %s24, 1
      %p89 = por %p87, %p88
      %p91 = scmp.ne.s32.totalorder %s76, %s90
      %p92 = scmp.eq.s32.totalorder %s24, 0
      %p93 = por %p91, %p92
      %s95 = sadd.s32 %s94, 1
      %p98 = scmp.eq.s32.totalorder %s18, 1
      %p99 = scmp.ne.s32.totalorder %s94, %s96
      %p100 = scmp.eq.s32.totalorder %s18, 0
      %p101 = por %p99, %p100
      %p102 = scmp.ne.s32.totalorder %s94, %s96
      %p103 = scmp.eq.s32.totalorder %s23, 1
      %p104 = por %p102, %p103
      %p105 = scmp.ne.s32.totalorder %s96, %s97
      %p106 = scmp.eq.s32.totalorder %s23, 0
      %p107 = por %p105, %p106
      %p108 = scmp.ne.s32.totalorder %s96, %s97
      %p109 = scmp.eq.s32.totalorder %s24, 1
      %p110 = por %p108, %p109
      %p112 = scmp.ne.s32.totalorder %s97, %s111
      %p113 = scmp.eq.s32.totalorder %s24, 0
      %p114 = por %p112, %p113
      %s116 = sadd.s32 %s115, 1
      %p119 = scmp.eq.s32.totalorder %s18, 1
      %p120 = scmp.ne.s32.totalorder %s115, %s117
      %p121 = scmp.eq.s32.totalorder %s18, 0
      %p122 = por %p120, %p121
      %p123 = scmp.ne.s32.totalorder %s115, %s117
      %p124 = scmp.eq.s32.totalorder %s23, 1
      %p125 = por %p123, %p124
      %p126 = scmp.ne.s32.totalorder %s117, %s118
      %p127 = scmp.eq.s32.totalorder %s23, 0
      %p128 = por %p126, %p127
      %p129 = scmp.ne.s32.totalorder %s117, %s118
      %p130 = scmp.eq.s32.totalorder %s24, 1
      %p131 = por %p129, %p130
      %p133 = scmp.ne.s32.totalorder %s118, %s132
      %p134 = scmp.eq.s32.totalorder %s24, 0
      %p135 = por %p133, %p134
      %s136 = ssub.s32 %s18, %s25
      %p137 = scmp.eq.s32.totalorder %s136, 0
      %s139 = sadd.s32 %s138, 1
      %s140 = scalar_select %p137, %s138, %s139
      %p143 = pneg %p137
      %p144 = scmp.eq.s32.totalorder %s18, 1
      %p145 = por %p143, %p144
      %p146 = scmp.ne.s32.totalorder %s138, %s141
      %p147 = scmp.eq.s32.totalorder %s18, 0
      %p148 = por %p146, %p147
      %p149 = scmp.ne.s32.totalorder %s138, %s141
      %p150 = scmp.eq.s32.totalorder %s23, 1
      %p151 = por %p149, %p150
      %p152 = scmp.ne.s32.totalorder %s141, %s142
      %p153 = scmp.eq.s32.totalorder %s23, 0
      %p154 = por %p152, %p153
      %p155 = scmp.ne.s32.totalorder %s141, %s142
      %p156 = scmp.eq.s32.totalorder %s24, 1
      %p157 = por %p155, %p156
      %p159 = scmp.ne.s32.totalorder %s142, %s158
      %p160 = scmp.eq.s32.totalorder %s24, 0
      %p161 = por %p159, %p160
      %p162 = scmp.le.s32.totalorder 1, %s18
      %p163 = scmp.lt.s32.totalorder %s18, 3
      %p164 = pnand %p162, %p163
      %p165 = pneg %p164
      // Predicated region
      $region9: #{tpu_custom_call.1} parent=5 // pred_check
        _
      $region10: #{tpu_custom_call.1} parent=5 // pred_check_branch
        %167 = sbr.rel (%p164) target = $region12
      $region11: #{tpu_custom_call.1} parent=5 // pred_region
        %s168 = ssub.s32 %s18, 1
        // Predicated region
        $region13: #{tpu_custom_call.1} parent=11 // pred_check
          %p169 = pneg %p65
        $region14: #{tpu_custom_call.1} parent=11 // pred_check_branch
          %171 = sbr.rel (%p169) target = $region16
        $region15: #{tpu_custom_call.1} parent=11 // pred_region
          %s173 = ssub.s32 6144, 6144
          %174 = vsyncadd [#allocation6], %s173
          %s175 = sshll.u32 [#allocation5], 4
          %s176 = int_to_ptr.vmem [resolvable:$true] %s175
          %181 = dma.hbm_to_vmem [thread:$0]  %s1, 6144, %s176, [#allocation6], 128, 128, 8
        $region16: #{tpu_custom_call.1} parent=11 // pred_fallthru
          _
        // Predicated region
        $region17: #{tpu_custom_call.1} parent=11 // pred_check
          %p182 = pneg %p86
        $region18: #{tpu_custom_call.1} parent=11 // pred_check_branch
          %184 = sbr.rel (%p182) target = $region20
        $region19: #{tpu_custom_call.1} parent=11 // pred_region
          _
        $region20: #{tpu_custom_call.1} parent=11 // pred_fallthru
          _
        // Predicated region
        $region21: #{tpu_custom_call.1} parent=11 // pred_check
          %p185 = pneg %p107
        $region22: #{tpu_custom_call.1} parent=11 // pred_check_branch
          %187 = sbr.rel (%p185) target = $region24
        $region23: #{tpu_custom_call.1} parent=11 // pred_region
          %s189 = ssub.s32 6144, 6144
          %190 = vsyncadd [#allocation6], %s189
          %s191 = sshll.u32 [#allocation7], 4
          %s192 = int_to_ptr.vmem [resolvable:$true] %s191
          %197 = dma.hbm_to_vmem [thread:$0]  %s3, 6144, %s192, [#allocation6], 128, 128, 8
        $region24: #{tpu_custom_call.1} parent=11 // pred_fallthru
          _
        // Predicated region
        $region25: #{tpu_custom_call.1} parent=11 // pred_check
          %p198 = pneg %p128
        $region26: #{tpu_custom_call.1} parent=11 // pred_check_branch
          %200 = sbr.rel (%p198) target = $region28
        $region27: #{tpu_custom_call.1} parent=11 // pred_region
          _
        $region28: #{tpu_custom_call.1} parent=11 // pred_fallthru
          _
      $region12: #{tpu_custom_call.1} parent=5 // pred_fallthru
        _
      %p201 = scmp.lt.s32.totalorder %s18, 2
      // Predicated region
      $region29: #{tpu_custom_call.1} parent=5 // pred_check
        %p202 = pneg %p201
      $region30: #{tpu_custom_call.1} parent=5 // pred_check_branch
        %204 = sbr.rel (%p202) target = $region32
      $region31: #{tpu_custom_call.1} parent=5 // pred_region
        // Predicated region
        $region33: #{tpu_custom_call.1} parent=31 // pred_check
          %p205 = pneg %p38
        $region34: #{tpu_custom_call.1} parent=31 // pred_check_branch
          %207 = sbr.rel (%p205) target = $region36
        $region35: #{tpu_custom_call.1} parent=31 // pred_region
          %s208 = sand.u32 %s28, 1
          %s209 = scalar_lea.sflag [#allocation3], %s208
          %s210 = sand.u32 %s28, 1
          %s211 = smul.addr %s210, 16
          %s212 = scalar_lea.vmem [#allocation2], %s211
          %s214 = ssub.s32 256, 256
          %215 = vsyncadd %s209, %s214
          %s216 = smul.addr %s18, 2
          %s217 = smul.addr %s216, 128
          %s218 = scalar_lea.hbm %s0, %s217
          %s219 = sshll.u32 %s212, 4
          %s220 = int_to_ptr.vmem [resolvable:$true] %s219
          %225 = dma.hbm_to_vmem [thread:$0]  %s218, 256, %s220, %s209, 128, 128, 8
        $region36: #{tpu_custom_call.1} parent=31 // pred_fallthru
          _
      $region32: #{tpu_custom_call.1} parent=5 // pred_fallthru
        _
      %p226 = scmp.le.s32.totalorder 1, %s18
      %p227 = scmp.lt.s32.totalorder %s18, 3
      %p228 = pnand %p226, %p227
      %p229 = pneg %p228
      // Predicated region
      $region37: #{tpu_custom_call.1} parent=5 // pred_check
        _
      $region38: #{tpu_custom_call.1} parent=5 // pred_check_branch
        %231 = sbr.rel (%p228) target = $region40
      $region39: #{tpu_custom_call.1} parent=5 // pred_region
        %s232 = ssub.s32 %s18, 1
        %s233 = sand.u32 %s31, 1
        %s234 = scalar_lea.sflag [#allocation3], %s233
        %s235 = sand.u32 %s31, 1
        %s236 = smul.addr %s235, 16
        %s237 = scalar_lea.vmem [#allocation2], %s236
        // Predicated region
        $region41: #{tpu_custom_call.1} parent=39 // pred_check
          %p238 = pneg %p44
        $region42: #{tpu_custom_call.1} parent=39 // pred_check_branch
          %240 = sbr.rel (%p238) target = $region44
        $region43: #{tpu_custom_call.1} parent=39 // pred_region
          %241 = dma.done %s234, 256
        $region44: #{tpu_custom_call.1} parent=39 // pred_fallthru
          _
        // Predicated region
        $region45: #{tpu_custom_call.1} parent=39 // pred_check
          %p242 = pneg %p65
        $region46: #{tpu_custom_call.1} parent=39 // pred_check_branch
          %244 = sbr.rel (%p242) target = $region48
        $region47: #{tpu_custom_call.1} parent=39 // pred_region
          %245 = dma.done [#allocation6], 6144
        $region48: #{tpu_custom_call.1} parent=39 // pred_fallthru
          _
        // Predicated region
        $region49: #{tpu_custom_call.1} parent=39 // pred_check
          %p246 = pneg %p107
        $region50: #{tpu_custom_call.1} parent=39 // pred_check_branch
          %248 = sbr.rel (%p246) target = $region52
        $region51: #{tpu_custom_call.1} parent=39 // pred_region
          %249 = dma.done [#allocation6], 6144
        $region52: #{tpu_custom_call.1} parent=39 // pred_fallthru
          _
        %s250 = sand.u32 %s31, 1
        %s251 = scalar_lea.sflag [#allocation3], %s250
        %s252 = sand.u32 %s31, 1
        %s253 = smul.addr %s252, 16
        %s254 = scalar_lea.vmem [#allocation2], %s253
        %p255 = pneg %p44
        %p256 = pneg %p41
        %p257 = pneg %p65
        %p258 = pneg %p62
        %p259 = pneg %p86
        %p260 = pneg %p83
        %p261 = pneg %p107
        %p262 = pneg %p104
        %p263 = pneg %p128
        %p264 = pneg %p125
        %p265 = pneg %p154
        %p266 = pneg %p151
        %s267 = sand.u32 %s141, 1
        %s268 = scalar_lea.sflag [#allocation4], %s267
        %s269 = sand.u32 %s141, 1
        %s270 = smul.addr %s269, 16
        %s271 = scalar_lea.vmem [#allocation8], %s270
        %v272 = vld [vmem:[%s237] sm:$0xff]
        %v273 = vld [vmem:[%s237 + $0x8] sm:$0xff]
        %v274 = vld [vmem:[#allocation5] sm:$0xff]
        %v275 = vld [vmem:[#allocation5 + $0x8] sm:$0xff]
        %v276 = vld [vmem:[#allocation5 + $0x10] sm:$0xff]
        %v277 = vld [vmem:[#allocation5 + $0x18] sm:$0xff]
        %v278 = vld [vmem:[#allocation5 + $0x20] sm:$0xff]
        %v279 = vld [vmem:[#allocation5 + $0x28] sm:$0xff]
        %v280 = vld [vmem:[#allocation5 + $0x30] sm:$0xff]
        %v281 = vld [vmem:[#allocation5 + $0x38] sm:$0xff]
        %v282 = vld [vmem:[#allocation5 + $0x40] sm:$0xff]
        %v283 = vld [vmem:[#allocation5 + $0x48] sm:$0xff]
        %v284 = vld [vmem:[#allocation5 + $0x50] sm:$0xff]
        %v285 = vld [vmem:[#allocation5 + $0x58] sm:$0xff]
        %v286 = vld [vmem:[#allocation5 + $0x60] sm:$0xff]
        %v287 = vld [vmem:[#allocation5 + $0x68] sm:$0xff]
        %v288 = vld [vmem:[#allocation5 + $0x70] sm:$0xff]
        %v289 = vld [vmem:[#allocation5 + $0x78] sm:$0xff]
        %v290 = vld [vmem:[#allocation5 + $0x80] sm:$0xff]
        %v291 = vld [vmem:[#allocation5 + $0x88] sm:$0xff]
        %v292 = vld [vmem:[#allocation5 + $0x90] sm:$0xff]
        %v293 = vld [vmem:[#allocation5 + $0x98] sm:$0xff]
        %v294 = vld [vmem:[#allocation5 + $0xa0] sm:$0xff]
        %v295 = vld [vmem:[#allocation5 + $0xa8] sm:$0xff]
        %v296 = vld [vmem:[#allocation5 + $0xb0] sm:$0xff]
        %v297 = vld [vmem:[#allocation5 + $0xb8] sm:$0xff]
        %v298 = vld [vmem:[#allocation5 + $0xc0] sm:$0xff]
        %v299 = vld [vmem:[#allocation5 + $0xc8] sm:$0xff]
        %v300 = vld [vmem:[#allocation5 + $0xd0] sm:$0xff]
        %v301 = vld [vmem:[#allocation5 + $0xd8] sm:$0xff]
        %v302 = vld [vmem:[#allocation5 + $0xe0] sm:$0xff]
        %v303 = vld [vmem:[#allocation5 + $0xe8] sm:$0xff]
        %v304 = vld [vmem:[#allocation5 + $0xf0] sm:$0xff]
        %v305 = vld [vmem:[#allocation5 + $0xf8] sm:$0xff]
        %v306 = vld [vmem:[#allocation5 + $0x100] sm:$0xff]
        %v307 = vld [vmem:[#allocation5 + $0x108] sm:$0xff]
        %v308 = vld [vmem:[#allocation5 + $0x110] sm:$0xff]
        %v309 = vld [vmem:[#allocation5 + $0x118] sm:$0xff]
        %v310 = vld [vmem:[#allocation5 + $0x120] sm:$0xff]
        %v311 = vld [vmem:[#allocation5 + $0x128] sm:$0xff]
        %v312 = vld [vmem:[#allocation5 + $0x130] sm:$0xff]
        %v313 = vld [vmem:[#allocation5 + $0x138] sm:$0xff]
        %v314 = vld [vmem:[#allocation5 + $0x140] sm:$0xff]
        %v315 = vld [vmem:[#allocation5 + $0x148] sm:$0xff]
        %v316 = vld [vmem:[#allocation5 + $0x150] sm:$0xff]
        %v317 = vld [vmem:[#allocation5 + $0x158] sm:$0xff]
        %v318 = vld [vmem:[#allocation5 + $0x160] sm:$0xff]
        %v319 = vld [vmem:[#allocation5 + $0x168] sm:$0xff]
        %v320 = vld [vmem:[#allocation5 + $0x170] sm:$0xff]
        %v321 = vld [vmem:[#allocation5 + $0x178] sm:$0xff]
        %vm324 = vcmask 1040384
        %v325 = vrot.slane %v272, 7
        %v326 = vrot.slane %v273, 7
        %v327 = vsel %vm324, %v325, %v326
        %v330 = vsel %vm324, 0.0, %v325
        %vm331 = vcmask 1046528
        %v332 = vrot.slane %v272, 1
        %v333 = vrot.slane %v273, 1
        %v334 = vsel %vm331, %v332, %v333
        %v337 = vsel %vm331, %v333, 0.0
        %v338 = vld [vmem:[%s2] sm:$0x1]
        %v340 = vlaneseq
        %v341 = vshrl.u32 %v340, 7
        %v342 = vsub.s32 0, %v341
        %v343 = vrot.slane %v338, %v342
        %345 = vmatprep.subr.mxu0 0.0
        %346 = vmatpush1.msra.mxu0 %v274
        %347 = vmatprep.subr.mxu0 0.0
        %348 = vmatpush1.msra.mxu0 %v275
        %349 = vmatprep.subr.mxu0 0.0
        %350 = vmatpush1.msra.mxu0 %v276
        %351 = vmatprep.subr.mxu0 0.0
        %352 = vmatpush1.msra.mxu0 %v277
        %353 = vmatprep.subr.mxu0 0.0
        %354 = vmatpush1.msra.mxu0 %v278
        %355 = vmatprep.subr.mxu0 0.0
        %356 = vmatpush1.msra.mxu0 %v279
        %357 = vmatprep.subr.mxu0 0.0
        %358 = vmatpush1.msra.mxu0 %v280
        %359 = vmatprep.subr.mxu0 0.0
        %360 = vmatpush1.msra.mxu0 %v281
        %361 = vmatprep.subr.mxu0 0.0
        %362 = vmatpush1.msra.mxu0 %v282
        %363 = vmatprep.subr.mxu0 0.0
        %364 = vmatpush1.msra.mxu0 %v283
        %365 = vmatprep.subr.mxu0 0.0
        %366 = vmatpush1.msra.mxu0 %v284
        %367 = vmatprep.subr.mxu0 0.0
        %368 = vmatpush1.msra.mxu0 %v285
        %369 = vmatprep.subr.mxu0 0.0
        %370 = vmatpush1.msra.mxu0 %v286
        %371 = vmatprep.subr.mxu0 0.0
        %372 = vmatpush1.msra.mxu0 %v287
        %373 = vmatprep.subr.mxu0 0.0
        %374 = vmatpush1.msra.mxu0 %v288
        %375 = vmatprep.subr.mxu0 0.0
        %376 = vmatpush1.msra.mxu0 %v289
        %377 = vmatprep.subr.mxu0 0.0
        %378 = vmatpush1.msra.mxu0 %v290
        %379 = vmatprep.subr.mxu0 0.0
        %380 = vmatpush1.msra.mxu0 %v291
        %381 = vmatprep.subr.mxu0 0.0
        %382 = vmatpush1.msra.mxu0 %v292
        %383 = vmatprep.subr.mxu0 0.0
        %384 = vmatpush1.msra.mxu0 %v293
        %385 = vmatprep.subr.mxu0 0.0
        %386 = vmatpush1.msra.mxu0 %v294
        %387 = vmatprep.subr.mxu0 0.0
        %388 = vmatpush1.msra.mxu0 %v295
        %389 = vmatprep.subr.mxu0 0.0
        %390 = vmatpush1.msra.mxu0 %v296
        %391 = vmatprep.subr.mxu0 0.0
        %392 = vmatpush1.msra.mxu0 %v297
        %393 = vmatprep.subr.mxu0 0.0
        %394 = vmatpush1.msra.mxu0 %v298
        %395 = vmatprep.subr.mxu0 0.0
        %396 = vmatpush1.msra.mxu0 %v299
        %397 = vmatprep.subr.mxu0 0.0
        %398 = vmatpush1.msra.mxu0 %v300
        %399 = vmatprep.subr.mxu0 0.0
        %400 = vmatpush1.msra.mxu0 %v301
        %401 = vmatprep.subr.mxu0 0.0
        %402 = vmatpush1.msra.mxu0 %v302
        %403 = vmatprep.subr.mxu0 0.0
        %404 = vmatpush1.msra.mxu0 %v303
        %405 = vmatprep.subr.mxu0 0.0
        %406 = vmatpush1.msra.mxu0 %v304
        %407 = vmatprep.subr.mxu0 0.0
        %408 = vmatpush1.msra.mxu0 %v305
        %409 = vmatprep.mubr.f32.mxu0 %v272
        %410 = vmatmul.mubr.f32.gmra.mrb[0].mxu0 %v330
        %v411 = vpop.f32.mrb[0].mxu0
        %v412 = vadd.f32 %v343, %v411
        %v413 = vpop.f32.mrb[0].mxu0
        %414 = vmatprep.mubr.f32.mxu0 %v273
        %415 = vmatmul.mubr.f32.gmra.mrb[0].mxu0 %v327
        %v416 = vpop.f32.mrb[0].mxu0
        %v417 = vadd.f32 %v343, %v416
        %v418 = vpop.f32.mrb[0].mxu0
        %419 = vdwg.mxu0
        %420 = vmatprep.subr.mxu0 0.0
        %421 = vmatpush1.msra.mxu0 %v306
        %422 = vmatprep.subr.mxu0 0.0
        %423 = vmatpush1.msra.mxu0 %v307
        %424 = vmatprep.subr.mxu0 0.0
        %425 = vmatpush1.msra.mxu0 %v308
        %426 = vmatprep.subr.mxu0 0.0
        %427 = vmatpush1.msra.mxu0 %v309
        %428 = vmatprep.subr.mxu0 0.0
        %429 = vmatpush1.msra.mxu0 %v310
        %430 = vmatprep.subr.mxu0 0.0
        %431 = vmatpush1.msra.mxu0 %v311
        %432 = vmatprep.subr.mxu0 0.0
        %433 = vmatpush1.msra.mxu0 %v312
        %434 = vmatprep.subr.mxu0 0.0
        %435 = vmatpush1.msra.mxu0 %v313
        %436 = vmatprep.subr.mxu0 0.0
        %437 = vmatpush1.msra.mxu0 %v314
        %438 = vmatprep.subr.mxu0 0.0
        %439 = vmatpush1.msra.mxu0 %v315
        %440 = vmatprep.subr.mxu0 0.0
        %441 = vmatpush1.msra.mxu0 %v316
        %442 = vmatprep.subr.mxu0 0.0
        %443 = vmatpush1.msra.mxu0 %v317
        %444 = vmatprep.subr.mxu0 0.0
        %445 = vmatpush1.msra.mxu0 %v318
        %446 = vmatprep.subr.mxu0 0.0
        %447 = vmatpush1.msra.mxu0 %v319
        %448 = vmatprep.subr.mxu0 0.0
        %449 = vmatpush1.msra.mxu0 %v320
        %450 = vmatprep.subr.mxu0 0.0
        %451 = vmatpush1.msra.mxu0 %v321
        %452 = vmatprep.subr.mxu0 0.0
        %453 = vmatpush1.msra.mxu0 0.0
        %454 = vmatprep.subr.mxu0 0.0
        %455 = vmatpush1.msra.mxu0 0.0
        %456 = vmatprep.subr.mxu0 0.0
        %457 = vmatpush1.msra.mxu0 0.0
        %458 = vmatprep.subr.mxu0 0.0
        %459 = vmatpush1.msra.mxu0 0.0
        %460 = vmatprep.subr.mxu0 0.0
        %461 = vmatpush1.msra.mxu0 0.0
        %462 = vmatprep.subr.mxu0 0.0
        %463 = vmatpush1.msra.mxu0 0.0
        %464 = vmatprep.subr.mxu0 0.0
        %465 = vmatpush1.msra.mxu0 0.0
        %466 = vmatprep.subr.mxu0 0.0
        %467 = vmatpush1.msra.mxu0 0.0
        %468 = vmatprep.subr.mxu0 0.0
        %469 = vmatpush1.msra.mxu0 0.0
        %470 = vmatprep.subr.mxu0 0.0
        %471 = vmatpush1.msra.mxu0 0.0
        %472 = vmatprep.subr.mxu0 0.0
        %473 = vmatpush1.msra.mxu0 0.0
        %474 = vmatprep.subr.mxu0 0.0
        %475 = vmatpush1.msra.mxu0 0.0
        %476 = vmatprep.subr.mxu0 0.0
        %477 = vmatpush1.msra.mxu0 0.0
        %478 = vmatprep.subr.mxu0 0.0
        %479 = vmatpush1.msra.mxu0 0.0
        %480 = vmatprep.subr.mxu0 0.0
        %481 = vmatpush1.msra.mxu0 0.0
        %482 = vmatprep.subr.mxu0 0.0
        %483 = vmatpush1.msra.mxu0 0.0
        %484 = vmatprep.mubr.f32.mxu0 0.0
        %485 = vmatmul.mubr.f32.gmra.mrb[0].mxu0 %v334
        %v486 = vpop.f32.mrb[0].mxu0
        %v487 = vadd.f32 %v412, %v486
        %v488 = vpop.f32.mrb[0].mxu0
        %489 = vmatprep.mubr.f32.mxu0 0.0
        %490 = vmatmul.mubr.f32.gmra.mrb[0].mxu0 %v337
        %v491 = vpop.f32.mrb[0].mxu0
        %v492 = vadd.f32 %v417, %v491
        %v493 = vpop.f32.mrb[0].mxu0
        %494 = vdwg.mxu0
        %v495 = vmax.f32 %v487, 0.0
        %v496 = vmax.f32 %v492, 0.0
        %v497 = vld [vmem:[#allocation7] sm:$0xff]
        %v498 = vld [vmem:[#allocation7 + $0x8] sm:$0xff]
        %v499 = vld [vmem:[#allocation7 + $0x10] sm:$0xff]
        %v500 = vld [vmem:[#allocation7 + $0x18] sm:$0xff]
        %v501 = vld [vmem:[#allocation7 + $0x20] sm:$0xff]
        %v502 = vld [vmem:[#allocation7 + $0x28] sm:$0xff]
        %v503 = vld [vmem:[#allocation7 + $0x30] sm:$0xff]
        %v504 = vld [vmem:[#allocation7 + $0x38] sm:$0xff]
        %v505 = vld [vmem:[#allocation7 + $0x40] sm:$0xff]
        %v506 = vld [vmem:[#allocation7 + $0x48] sm:$0xff]
        %v507 = vld [vmem:[#allocation7 + $0x50] sm:$0xff]
        %v508 = vld [vmem:[#allocation7 + $0x58] sm:$0xff]
        %v509 = vld [vmem:[#allocation7 + $0x60] sm:$0xff]
        %v510 = vld [vmem:[#allocation7 + $0x68] sm:$0xff]
        %v511 = vld [vmem:[#allocation7 + $0x70] sm:$0xff]
        %v512 = vld [vmem:[#allocation7 + $0x78] sm:$0xff]
        %v513 = vld [vmem:[#allocation7 + $0x80] sm:$0xff]
        %v514 = vld [vmem:[#allocation7 + $0x88] sm:$0xff]
        %v515 = vld [vmem:[#allocation7 + $0x90] sm:$0xff]
        %v516 = vld [vmem:[#allocation7 + $0x98] sm:$0xff]
        %v517 = vld [vmem:[#allocation7 + $0xa0] sm:$0xff]
        %v518 = vld [vmem:[#allocation7 + $0xa8] sm:$0xff]
        %v519 = vld [vmem:[#allocation7 + $0xb0] sm:$0xff]
        %v520 = vld [vmem:[#allocation7 + $0xb8] sm:$0xff]
        %v521 = vld [vmem:[#allocation7 + $0xc0] sm:$0xff]
        %v522 = vld [vmem:[#allocation7 + $0xc8] sm:$0xff]
        %v523 = vld [vmem:[#allocation7 + $0xd0] sm:$0xff]
        %v524 = vld [vmem:[#allocation7 + $0xd8] sm:$0xff]
        %v525 = vld [vmem:[#allocation7 + $0xe0] sm:$0xff]
        %v526 = vld [vmem:[#allocation7 + $0xe8] sm:$0xff]
        %v527 = vld [vmem:[#allocation7 + $0xf0] sm:$0xff]
        %v528 = vld [vmem:[#allocation7 + $0xf8] sm:$0xff]
        %v529 = vld [vmem:[#allocation7 + $0x100] sm:$0xff]
        %v530 = vld [vmem:[#allocation7 + $0x108] sm:$0xff]
        %v531 = vld [vmem:[#allocation7 + $0x110] sm:$0xff]
        %v532 = vld [vmem:[#allocation7 + $0x118] sm:$0xff]
        %v533 = vld [vmem:[#allocation7 + $0x120] sm:$0xff]
        %v534 = vld [vmem:[#allocation7 + $0x128] sm:$0xff]
        %v535 = vld [vmem:[#allocation7 + $0x130] sm:$0xff]
        %v536 = vld [vmem:[#allocation7 + $0x138] sm:$0xff]
        %v537 = vld [vmem:[#allocation7 + $0x140] sm:$0xff]
        %v538 = vld [vmem:[#allocation7 + $0x148] sm:$0xff]
        %v539 = vld [vmem:[#allocation7 + $0x150] sm:$0xff]
        %v540 = vld [vmem:[#allocation7 + $0x158] sm:$0xff]
        %v541 = vld [vmem:[#allocation7 + $0x160] sm:$0xff]
        %v542 = vld [vmem:[#allocation7 + $0x168] sm:$0xff]
        %v543 = vld [vmem:[#allocation7 + $0x170] sm:$0xff]
        %v544 = vld [vmem:[#allocation7 + $0x178] sm:$0xff]
        %v547 = vrot.slane %v495, 7
        %v548 = vrot.slane %v496, 7
        %v549 = vsel %vm324, %v547, %v548
        %v552 = vsel %vm324, 0.0, %v547
        %v553 = vrot.slane %v495, 1
        %v554 = vrot.slane %v496, 1
        %v555 = vsel %vm331, %v553, %v554
        %v558 = vsel %vm331, %v554, 0.0
        %v559 = vld [vmem:[%s4] sm:$0x1]
        %v561 = vlaneseq
        %v562 = vshrl.u32 %v561, 7
        %v563 = vsub.s32 0, %v562
        %v564 = vrot.slane %v559, %v563
        %566 = vmatprep.subr.mxu0 0.0
        %567 = vmatpush1.msra.mxu0 %v497
        %568 = vmatprep.subr.mxu0 0.0
        %569 = vmatpush1.msra.mxu0 %v498
        %570 = vmatprep.subr.mxu0 0.0
        %571 = vmatpush1.msra.mxu0 %v499
        %572 = vmatprep.subr.mxu0 0.0
        %573 = vmatpush1.msra.mxu0 %v500
        %574 = vmatprep.subr.mxu0 0.0
        %575 = vmatpush1.msra.mxu0 %v501
        %576 = vmatprep.subr.mxu0 0.0
        %577 = vmatpush1.msra.mxu0 %v502
        %578 = vmatprep.subr.mxu0 0.0
        %579 = vmatpush1.msra.mxu0 %v503
        %580 = vmatprep.subr.mxu0 0.0
        %581 = vmatpush1.msra.mxu0 %v504
        %582 = vmatprep.subr.mxu0 0.0
        %583 = vmatpush1.msra.mxu0 %v505
        %584 = vmatprep.subr.mxu0 0.0
        %585 = vmatpush1.msra.mxu0 %v506
        %586 = vmatprep.subr.mxu0 0.0
        %587 = vmatpush1.msra.mxu0 %v507
        %588 = vmatprep.subr.mxu0 0.0
        %589 = vmatpush1.msra.mxu0 %v508
        %590 = vmatprep.subr.mxu0 0.0
        %591 = vmatpush1.msra.mxu0 %v509
        %592 = vmatprep.subr.mxu0 0.0
        %593 = vmatpush1.msra.mxu0 %v510
        %594 = vmatprep.subr.mxu0 0.0
        %595 = vmatpush1.msra.mxu0 %v511
        %596 = vmatprep.subr.mxu0 0.0
        %597 = vmatpush1.msra.mxu0 %v512
        %598 = vmatprep.subr.mxu0 0.0
        %599 = vmatpush1.msra.mxu0 %v513
        %600 = vmatprep.subr.mxu0 0.0
        %601 = vmatpush1.msra.mxu0 %v514
        %602 = vmatprep.subr.mxu0 0.0
        %603 = vmatpush1.msra.mxu0 %v515
        %604 = vmatprep.subr.mxu0 0.0
        %605 = vmatpush1.msra.mxu0 %v516
        %606 = vmatprep.subr.mxu0 0.0
        %607 = vmatpush1.msra.mxu0 %v517
        %608 = vmatprep.subr.mxu0 0.0
        %609 = vmatpush1.msra.mxu0 %v518
        %610 = vmatprep.subr.mxu0 0.0
        %611 = vmatpush1.msra.mxu0 %v519
        %612 = vmatprep.subr.mxu0 0.0
        %613 = vmatpush1.msra.mxu0 %v520
        %614 = vmatprep.subr.mxu0 0.0
        %615 = vmatpush1.msra.mxu0 %v521
        %616 = vmatprep.subr.mxu0 0.0
        %617 = vmatpush1.msra.mxu0 %v522
        %618 = vmatprep.subr.mxu0 0.0
        %619 = vmatpush1.msra.mxu0 %v523
        %620 = vmatprep.subr.mxu0 0.0
        %621 = vmatpush1.msra.mxu0 %v524
        %622 = vmatprep.subr.mxu0 0.0
        %623 = vmatpush1.msra.mxu0 %v525
        %624 = vmatprep.subr.mxu0 0.0
        %625 = vmatpush1.msra.mxu0 %v526
        %626 = vmatprep.subr.mxu0 0.0
        %627 = vmatpush1.msra.mxu0 %v527
        %628 = vmatprep.subr.mxu0 0.0
        %629 = vmatpush1.msra.mxu0 %v528
        %630 = vmatprep.mubr.f32.mxu0 %v495
        %631 = vmatmul.mubr.f32.gmra.mrb[0].mxu0 %v552
        %v632 = vpop.f32.mrb[0].mxu0
        %v633 = vadd.f32 %v564, %v632
        %v634 = vpop.f32.mrb[0].mxu0
        %635 = vmatprep.mubr.f32.mxu0 %v496
        %636 = vmatmul.mubr.f32.gmra.mrb[0].mxu0 %v549
        %v637 = vpop.f32.mrb[0].mxu0
        %v638 = vadd.f32 %v564, %v637
        %v639 = vpop.f32.mrb[0].mxu0
        %640 = vdwg.mxu0
        %641 = vmatprep.subr.mxu0 0.0
        %642 = vmatpush1.msra.mxu0 %v529
        %643 = vmatprep.subr.mxu0 0.0
        %644 = vmatpush1.msra.mxu0 %v530
        %645 = vmatprep.subr.mxu0 0.0
        %646 = vmatpush1.msra.mxu0 %v531
        %647 = vmatprep.subr.mxu0 0.0
        %648 = vmatpush1.msra.mxu0 %v532
        %649 = vmatprep.subr.mxu0 0.0
        %650 = vmatpush1.msra.mxu0 %v533
        %651 = vmatprep.subr.mxu0 0.0
        %652 = vmatpush1.msra.mxu0 %v534
        %653 = vmatprep.subr.mxu0 0.0
        %654 = vmatpush1.msra.mxu0 %v535
        %655 = vmatprep.subr.mxu0 0.0
        %656 = vmatpush1.msra.mxu0 %v536
        %657 = vmatprep.subr.mxu0 0.0
        %658 = vmatpush1.msra.mxu0 %v537
        %659 = vmatprep.subr.mxu0 0.0
        %660 = vmatpush1.msra.mxu0 %v538
        %661 = vmatprep.subr.mxu0 0.0
        %662 = vmatpush1.msra.mxu0 %v539
        %663 = vmatprep.subr.mxu0 0.0
        %664 = vmatpush1.msra.mxu0 %v540
        %665 = vmatprep.subr.mxu0 0.0
        %666 = vmatpush1.msra.mxu0 %v541
        %667 = vmatprep.subr.mxu0 0.0
        %668 = vmatpush1.msra.mxu0 %v542
        %669 = vmatprep.subr.mxu0 0.0
        %670 = vmatpush1.msra.mxu0 %v543
        %671 = vmatprep.subr.mxu0 0.0
        %672 = vmatpush1.msra.mxu0 %v544
        %673 = vmatprep.subr.mxu0 0.0
        %674 = vmatpush1.msra.mxu0 0.0
        %675 = vmatprep.subr.mxu0 0.0
        %676 = vmatpush1.msra.mxu0 0.0
        %677 = vmatprep.subr.mxu0 0.0
        %678 = vmatpush1.msra.mxu0 0.0
        %679 = vmatprep.subr.mxu0 0.0
        %680 = vmatpush1.msra.mxu0 0.0
        %681 = vmatprep.subr.mxu0 0.0
        %682 = vmatpush1.msra.mxu0 0.0
        %683 = vmatprep.subr.mxu0 0.0
        %684 = vmatpush1.msra.mxu0 0.0
        %685 = vmatprep.subr.mxu0 0.0
        %686 = vmatpush1.msra.mxu0 0.0
        %687 = vmatprep.subr.mxu0 0.0
        %688 = vmatpush1.msra.mxu0 0.0
        %689 = vmatprep.subr.mxu0 0.0
        %690 = vmatpush1.msra.mxu0 0.0
        %691 = vmatprep.subr.mxu0 0.0
        %692 = vmatpush1.msra.mxu0 0.0
        %693 = vmatprep.subr.mxu0 0.0
        %694 = vmatpush1.msra.mxu0 0.0
        %695 = vmatprep.subr.mxu0 0.0
        %696 = vmatpush1.msra.mxu0 0.0
        %697 = vmatprep.subr.mxu0 0.0
        %698 = vmatpush1.msra.mxu0 0.0
        %699 = vmatprep.subr.mxu0 0.0
        %700 = vmatpush1.msra.mxu0 0.0
        %701 = vmatprep.subr.mxu0 0.0
        %702 = vmatpush1.msra.mxu0 0.0
        %703 = vmatprep.subr.mxu0 0.0
        %704 = vmatpush1.msra.mxu0 0.0
        %705 = vmatprep.mubr.f32.mxu0 0.0
        %706 = vmatmul.mubr.f32.gmra.mrb[0].mxu0 %v555
        %v707 = vpop.f32.mrb[0].mxu0
        %v708 = vadd.f32 %v633, %v707
        %v709 = vpop.f32.mrb[0].mxu0
        %710 = vmatprep.mubr.f32.mxu0 0.0
        %711 = vmatmul.mubr.f32.gmra.mrb[0].mxu0 %v558
        %v712 = vpop.f32.mrb[0].mxu0
        %v713 = vadd.f32 %v638, %v712
        %v714 = vpop.f32.mrb[0].mxu0
        %715 = vdwg.mxu0
        %v716 = vadd.f32 %v708, %v272
        %v717 = vadd.f32 %v713, %v273
        %v718 = vmax.f32 %v716, 0.0
        %v719 = vmax.f32 %v717, 0.0
        %720 = vst [vmem:[%s271] sm:$0xff] %v718
        %721 = vst [vmem:[%s271 + $0x8] sm:$0xff] %v719
        %s722 = sand.u32 %s141, 1
        %s723 = scalar_lea.sflag [#allocation4], %s722
        %s724 = sand.u32 %s141, 1
        %s725 = smul.addr %s724, 16
        %s726 = scalar_lea.vmem [#allocation8], %s725
        // Predicated region
        $region53: #{tpu_custom_call.1} parent=39 // pred_check
          %p727 = pneg %p151
        $region54: #{tpu_custom_call.1} parent=39 // pred_check_branch
          %729 = sbr.rel (%p727) target = $region56
        $region55: #{tpu_custom_call.1} parent=39 // pred_region
          %s731 = ssub.s32 256, 256
          %732 = vsyncadd %s723, %s731
          %s733 = smul.addr %s23, 2
          %s734 = smul.addr %s733, 128
          %s735 = scalar_lea.hbm %s5, %s734
          %s736 = sshll.u32 %s726, 4
          %s737 = int_to_ptr.vmem [resolvable:$true] %s736
          %742 = dma.vmem_to_hbm [thread:$0]  %s737, 256, %s735, %s723, 128, 128, 8
        $region56: #{tpu_custom_call.1} parent=39 // pred_fallthru
          _
      $region40: #{tpu_custom_call.1} parent=5 // pred_fallthru
        _
      %p743 = scmp.le.s32.totalorder 2, %s18
      // Predicated region
      $region57: #{tpu_custom_call.1} parent=5 // pred_check
        %p744 = pneg %p743
      $region58: #{tpu_custom_call.1} parent=5 // pred_check_branch
        %746 = sbr.rel (%p744) target = $region60
      $region59: #{tpu_custom_call.1} parent=5 // pred_region
        %s747 = ssub.s32 %s18, 2
        // Predicated region
        $region61: #{tpu_custom_call.1} parent=59 // pred_check
          %p748 = pneg %p157
        $region62: #{tpu_custom_call.1} parent=59 // pred_check_branch
          %750 = sbr.rel (%p748) target = $region64
        $region63: #{tpu_custom_call.1} parent=59 // pred_region
          %s751 = sand.u32 %s142, 1
          %s752 = scalar_lea.sflag [#allocation4], %s751
          %s753 = sand.u32 %s142, 1
          %s754 = smul.addr %s753, 16
          %s755 = scalar_lea.vmem [#allocation8], %s754
          %756 = dma.done %s752, 256
        $region64: #{tpu_custom_call.1} parent=59 // pred_fallthru
          _
      $region60: #{tpu_custom_call.1} parent=5 // pred_fallthru
        _
    $region6: #{tpu_custom_call.1} parent=1 // loop_footer
      %s22 = sadd.s32 1, %s18
    $region7: #{tpu_custom_call.1} parent=1 // loop_footer_branch
      %17 = sbr.rel target = $region3
    $region8: #{tpu_custom_call.1} parent=1 // loop_exit
      _
    %757 = vsyncpa [#allocation3], 1
    %s758 = scalar_lea.sflag [#allocation3], 1
    %759 = vsyncpa %s758, 1
    %760 = vsyncpa [#allocation6], 1
    %761 = vsyncpa [#allocation4], 1
    %s762 = scalar_lea.sflag [#allocation4], 1
    %763 = vsyncpa %s762, 1

</llo_original>
